<compile_context>
chip_gen: v5e
topology: v5e:2x2
jax: 0.10.0
libtpu: 0.0.40
codegen_flags: <defaults>
</compile_context>

<pallas_src>
import jax
import jax.numpy as jnp
from jax.experimental import pallas as pl
from jax.experimental.pallas import tpu as pltpu

_H1, _H2, _H3 = 16, 32, 64          # hidden sizes fixed by the PyTorch module
_OFF1, _OFF2, _OFF3, _OFF4 = 0, _H1, _H1 + _H2, _H1 + _H2 + _H3  # 0,16,48,112


def _round_up(n, m):
    return ((n + m - 1) // m) * m


def dqn_kernel(x_ref, w1_ref, w2_ref, w3_ref, w4_ref, b_ref, o_ref):
    # x_ref: (obs, TB) bf16 — batch on lanes.  w*_ref: (out, in) bf16.
    # b_ref: (16+32+64+A, 1) f32 packed biases.  o_ref: (A, TB) f32.
    h = x_ref[...]  # already bf16

    h = jnp.dot(w1_ref[...], h, preferred_element_type=jnp.float32)
    h = jnp.maximum(h + b_ref[_OFF1:_OFF2, :], 0.0).astype(jnp.bfloat16)

    h = jnp.dot(w2_ref[...], h, preferred_element_type=jnp.float32)
    h = jnp.maximum(h + b_ref[_OFF2:_OFF3, :], 0.0).astype(jnp.bfloat16)

    h = jnp.dot(w3_ref[...], h, preferred_element_type=jnp.float32)
    h = jnp.maximum(h + b_ref[_OFF3:_OFF4, :], 0.0).astype(jnp.bfloat16)

    h = jnp.dot(w4_ref[...], h, preferred_element_type=jnp.float32)
    o_ref[...] = (h + b_ref[_OFF4:, :]).astype(o_ref.dtype)


def dqn_forward(x, params, *, batch_tile=512):
    """x: (B, observation_size) f32, batch-major (same as the PyTorch module).

    params: PyTorch-native 'w1'..'w4' of shape (out, in) and 'b1'..'b4' of
    shape (out,), all float32.  Returns (B, action_size) float32 Q-values.
    """
    B, obs = x.shape
    A = params["w4"].shape[0]

    # Kernel operands: bf16 weights (halve weight DMA, MXU-native), biases
    # packed into a single column array (one operand instead of four).
    ws = [params[f"w{i}"].astype(jnp.bfloat16) for i in (1, 2, 3, 4)]
    b_packed = jnp.concatenate(
        [params[f"b{i}"].astype(jnp.float32).reshape(-1, 1) for i in (1, 2, 3, 4)],
        axis=0)

    # Batch rides the lane axis: transpose to (features, batch) and pad the
    # batch up to a lane-aligned tile multiple (handles the remainder tile).
    tb = min(batch_tile, _round_up(B, 128))
    b_pad = _round_up(B, tb)
    xt = jnp.zeros((obs, b_pad), jnp.bfloat16).at[:, :B].set(
        x.astype(jnp.bfloat16).T)

    out_t = pl.pallas_call(
        dqn_kernel,
        out_shape=jax.ShapeDtypeStruct((A, b_pad), jnp.float32),
        grid=(b_pad // tb,),
        in_specs=[
            pl.BlockSpec((obs, tb), lambda i: (0, i)),     # x tile: batch on lanes
            pl.BlockSpec(ws[0].shape, lambda i: (0, 0)),   # weights: VMEM-resident
            pl.BlockSpec(ws[1].shape, lambda i: (0, 0)),
            pl.BlockSpec(ws[2].shape, lambda i: (0, 0)),
            pl.BlockSpec(ws[3].shape, lambda i: (0, 0)),
            pl.BlockSpec(b_packed.shape, lambda i: (0, 0)),
        ],
        out_specs=pl.BlockSpec((A, tb), lambda i: (0, i)),  # lane-dense store
        compiler_params=pltpu.CompilerParams(
            dimension_semantics=("parallel",)),  # v7x: tiles across both TCs
    )(xt, *ws, b_packed)

    return out_t[:, :B].T


def init_params(key, observation_size, action_size):
    """Deterministic init mirroring nn.Linear (PyTorch (out, in) layout)."""
    dims = [(observation_size, _H1), (_H1, _H2), (_H2, _H3), (_H3, action_size)]
    params = {}
    for i, (fan_in, fan_out) in enumerate(dims, start=1):
        key, kw, kb = jax.random.split(key, 3)
        bound = 1.0 / (fan_in ** 0.5)  # PyTorch default uniform bound
        params[f"w{i}"] = jax.random.uniform(
            kw, (fan_out, fan_in), jnp.float32, -bound, bound)
        params[f"b{i}"] = jax.random.uniform(
            kb, (fan_out,), jnp.float32, -bound, bound)
    return params


def dqn_reference(x, params):
    """Pure-JAX reference with the same numerics (bf16 operands, f32 accum)."""
    h = x
    for i in (1, 2, 3, 4):
        w = params[f"w{i}"].astype(jnp.bfloat16)
        h = jnp.dot(h.astype(jnp.bfloat16), w.T,
                    preferred_element_type=jnp.float32) + params[f"b{i}"]
        if i < 4:
            h = jnp.maximum(h, 0.0)
    return h


if __name__ == "__main__":
    observation_size = 8
    action_size = 4
    batch = 2

    key = jax.random.PRNGKey(0)
    key, kx = jax.random.split(key)
    x = jax.random.normal(kx, (batch, observation_size), jnp.float32)
    params = init_params(key, observation_size, action_size)

    out = jax.block_until_ready(dqn_forward(x, params))
    ref = dqn_reference(x, params)

    assert out.shape == (batch, action_size)
    assert jnp.allclose(out, ref, atol=1e-3, rtol=1e-3), \
        float(jnp.max(jnp.abs(out - ref)))

    # TODO(synk): only the DQN forward pass is kernelized; the RL training
    # loop / gym environment in train.py has no Pallas equivalent.
    print("KERNEL_OK")
</pallas_src>

<mosaic_0001>
module attributes {stable_mosaic.version = 11 : i64} {
  func.func @dqn_kernel(%arg0: i32, %arg1: memref<8x128xbf16, #tpu.memory_space<vmem>>, %arg2: memref<16x8xbf16, #tpu.memory_space<vmem>>, %arg3: memref<32x16xbf16, #tpu.memory_space<vmem>>, %arg4: memref<64x32xbf16, #tpu.memory_space<vmem>>, %arg5: memref<4x64xbf16, #tpu.memory_space<vmem>>, %arg6: memref<116x1xf32, #tpu.memory_space<vmem>>, %arg7: memref<4x128xf32, #tpu.memory_space<vmem>>) attributes {dimension_semantics = [#tpu.dimension_semantics<parallel>], iteration_bounds = array<i64: 1>, scalar_prefetch = 0 : i64, scratch_operands = 0 : i64, tpu.core_type = #tpu.core_type<tc>, window_params = [{transform_indices = @transform_0, window_bounds = array<i64: 8, 128>}, {pipeline_mode = #tpu.pipeline_mode<synchronous>, transform_indices = @transform_1, window_bounds = array<i64: 16, 8>}, {pipeline_mode = #tpu.pipeline_mode<synchronous>, transform_indices = @transform_2, window_bounds = array<i64: 32, 16>}, {pipeline_mode = #tpu.pipeline_mode<synchronous>, transform_indices = @transform_3, window_bounds = array<i64: 64, 32>}, {pipeline_mode = #tpu.pipeline_mode<synchronous>, transform_indices = @transform_4, window_bounds = array<i64: 4, 64>}, {pipeline_mode = #tpu.pipeline_mode<synchronous>, transform_indices = @transform_5, window_bounds = array<i64: 116, 1>}, {transform_indices = @transform_6, window_bounds = array<i64: 4, 128>}]} {
    %c0 = arith.constant 0 : index
    %c0_0 = arith.constant 0 : index
    %0 = vector.load %arg1[%c0, %c0_0] : memref<8x128xbf16, #tpu.memory_space<vmem>>, vector<8x128xbf16>
    %c0_1 = arith.constant 0 : index
    %c0_2 = arith.constant 0 : index
    %1 = vector.load %arg2[%c0_1, %c0_2] : memref<16x8xbf16, #tpu.memory_space<vmem>>, vector<16x8xbf16>
    %cst = arith.constant dense<0.000000e+00> : vector<16x128xf32>
    %2 = tpu.matmul %1, %0, %cst {dimension_numbers = #tpu.dot_dimension_numbers<[1], [0], [0], [1], [0, 0, 1, 1], [], []>} : vector<16x8xbf16>, vector<8x128xbf16>, vector<16x128xf32> -> vector<16x128xf32>
    %c0_3 = arith.constant 0 : index
    %c0_4 = arith.constant 0 : index
    %3 = vector.load %arg6[%c0_3, %c0_4] : memref<116x1xf32, #tpu.memory_space<vmem>>, vector<16x1xf32>
    %4 = vector.broadcast %3 : vector<16x1xf32> to vector<16x128xf32>
    %5 = arith.addf %2, %4 : vector<16x128xf32>
    %cst_5 = arith.constant 0.000000e+00 : f32
    %6 = vector.broadcast %cst_5 : f32 to vector<16x128xf32>
    %7 = arith.maximumf %5, %6 : vector<16x128xf32>
    %8 = arith.truncf %7 : vector<16x128xf32> to vector<16x128xbf16>
    %c0_6 = arith.constant 0 : index
    %c0_7 = arith.constant 0 : index
    %9 = vector.load %arg3[%c0_6, %c0_7] : memref<32x16xbf16, #tpu.memory_space<vmem>>, vector<32x16xbf16>
    %cst_8 = arith.constant dense<0.000000e+00> : vector<32x128xf32>
    %10 = tpu.matmul %9, %8, %cst_8 {dimension_numbers = #tpu.dot_dimension_numbers<[1], [0], [0], [1], [0, 0, 1, 1], [], []>} : vector<32x16xbf16>, vector<16x128xbf16>, vector<32x128xf32> -> vector<32x128xf32>
    %c16 = arith.constant 16 : index
    %c0_9 = arith.constant 0 : index
    %11 = vector.load %arg6[%c16, %c0_9] : memref<116x1xf32, #tpu.memory_space<vmem>>, vector<32x1xf32>
    %12 = vector.broadcast %11 : vector<32x1xf32> to vector<32x128xf32>
    %13 = arith.addf %10, %12 : vector<32x128xf32>
    %cst_10 = arith.constant 0.000000e+00 : f32
    %14 = vector.broadcast %cst_10 : f32 to vector<32x128xf32>
    %15 = arith.maximumf %13, %14 : vector<32x128xf32>
    %16 = arith.truncf %15 : vector<32x128xf32> to vector<32x128xbf16>
    %c0_11 = arith.constant 0 : index
    %c0_12 = arith.constant 0 : index
    %17 = vector.load %arg4[%c0_11, %c0_12] : memref<64x32xbf16, #tpu.memory_space<vmem>>, vector<64x32xbf16>
    %cst_13 = arith.constant dense<0.000000e+00> : vector<64x128xf32>
    %18 = tpu.matmul %17, %16, %cst_13 {dimension_numbers = #tpu.dot_dimension_numbers<[1], [0], [0], [1], [0, 0, 1, 1], [], []>} : vector<64x32xbf16>, vector<32x128xbf16>, vector<64x128xf32> -> vector<64x128xf32>
    %c48 = arith.constant 48 : index
    %c0_14 = arith.constant 0 : index
    %19 = vector.load %arg6[%c48, %c0_14] : memref<116x1xf32, #tpu.memory_space<vmem>>, vector<64x1xf32>
    %20 = vector.broadcast %19 : vector<64x1xf32> to vector<64x128xf32>
    %21 = arith.addf %18, %20 : vector<64x128xf32>
    %cst_15 = arith.constant 0.000000e+00 : f32
    %22 = vector.broadcast %cst_15 : f32 to vector<64x128xf32>
    %23 = arith.maximumf %21, %22 : vector<64x128xf32>
    %24 = arith.truncf %23 : vector<64x128xf32> to vector<64x128xbf16>
    %c0_16 = arith.constant 0 : index
    %c0_17 = arith.constant 0 : index
    %25 = vector.load %arg5[%c0_16, %c0_17] : memref<4x64xbf16, #tpu.memory_space<vmem>>, vector<4x64xbf16>
    %cst_18 = arith.constant dense<0.000000e+00> : vector<4x128xf32>
    %26 = tpu.matmul %25, %24, %cst_18 {dimension_numbers = #tpu.dot_dimension_numbers<[1], [0], [0], [1], [0, 0, 1, 1], [], []>} : vector<4x64xbf16>, vector<64x128xbf16>, vector<4x128xf32> -> vector<4x128xf32>
    %c112 = arith.constant 112 : index
    %c0_19 = arith.constant 0 : index
    %27 = vector.load %arg6[%c112, %c0_19] : memref<116x1xf32, #tpu.memory_space<vmem>>, vector<4x1xf32>
    %28 = vector.broadcast %27 : vector<4x1xf32> to vector<4x128xf32>
    %29 = arith.addf %26, %28 : vector<4x128xf32>
    %c0_20 = arith.constant 0 : index
    %c0_21 = arith.constant 0 : index
    %30 = vector.load %arg7[%c0_20, %c0_21] : memref<4x128xf32, #tpu.memory_space<vmem>>, vector<4x128xf32>
    tpu.vector_store %arg7[%c0_20, %c0_21], %29 {strides = array<i32>} : memref<4x128xf32, #tpu.memory_space<vmem>>, vector<4x128xf32>,
    return
  }
  func.func @transform_0(%arg0: i32) -> (i32, i32) {
    %c0_i32 = arith.constant 0 : i32
    %c0_i32_0 = arith.constant 0 : i32
    return %c0_i32, %arg0 : i32, i32
  }
  func.func @transform_1(%arg0: i32) -> (i32, i32) {
    %c0_i32 = arith.constant 0 : i32
    %c0_i32_0 = arith.constant 0 : i32
    %c0_i32_1 = arith.constant 0 : i32
    return %c0_i32, %c0_i32_0 : i32, i32
  }
  func.func @transform_2(%arg0: i32) -> (i32, i32) {
    %c0_i32 = arith.constant 0 : i32
    %c0_i32_0 = arith.constant 0 : i32
    %c0_i32_1 = arith.constant 0 : i32
    return %c0_i32, %c0_i32_0 : i32, i32
  }
  func.func @transform_3(%arg0: i32) -> (i32, i32) {
    %c0_i32 = arith.constant 0 : i32
    %c0_i32_0 = arith.constant 0 : i32
    %c0_i32_1 = arith.constant 0 : i32
    return %c0_i32, %c0_i32_0 : i32, i32
  }
  func.func @transform_4(%arg0: i32) -> (i32, i32) {
    %c0_i32 = arith.constant 0 : i32
    %c0_i32_0 = arith.constant 0 : i32
    %c0_i32_1 = arith.constant 0 : i32
    return %c0_i32, %c0_i32_0 : i32, i32
  }
  func.func @transform_5(%arg0: i32) -> (i32, i32) {
    %c0_i32 = arith.constant 0 : i32
    %c0_i32_0 = arith.constant 0 : i32
    %c0_i32_1 = arith.constant 0 : i32
    return %c0_i32, %c0_i32_0 : i32, i32
  }
  func.func @transform_6(%arg0: i32) -> (i32, i32) {
    %c0_i32 = arith.constant 0 : i32
    %c0_i32_0 = arith.constant 0 : i32
    return %c0_i32, %arg0 : i32, i32
  }
}

</mosaic_0001>

<llo_original>
// kernel: tpu_custom_call.1
$region0: #{tpu_custom_call.1}
  #allocation0 [shape = 'u32[]', space=smem, size = 0x4, offset = 0x4, fixed_abs, tag = 'smem constant byte address 0x4 - core index']
  #allocation1 [shape = 'u32[72,128]{1,0:T(1,128)}', space=vmem, size = 0x9000, scoped, tag = 'internal scratch']
  %s0 = inlined_call_operand.vmem [shape: bf16[8,128], index: 0, kind: input, shape index: {}]
  %s1 = inlined_call_operand.vmem [shape: bf16[16,8], index: 1, kind: input, shape index: {}]
  %s2 = inlined_call_operand.vmem [shape: bf16[32,16], index: 2, kind: input, shape index: {}]
  %s3 = inlined_call_operand.vmem [shape: bf16[64,32], index: 3, kind: input, shape index: {}]
  %s4 = inlined_call_operand.vmem [shape: bf16[4,64], index: 4, kind: input, shape index: {}]
  %s5 = inlined_call_operand.vmem [shape: f32[116,1], index: 5, kind: input, shape index: {}]
  %s6 = inlined_call_operand.hbm [shape: f32[4,128], index: 6, kind: output, shape index: {}]
  %s7 = sld [smem:[#allocation0]]
  $region34: #{tpu_custom_call.1} parent=0
    _
  %s9 = ssub.s32 1, %s7
  %s10 = scalar_select 0, %s9, %s7
  $region1: #{tpu_custom_call.1} parent=0
    #allocation2 [shape = 'u8[2048]{0}', space=vmem, size = 0x800, scoped, tag = 'output window, operand 0, single buffered']
    #allocation3 [shape = 's32[1]{0}', space=sflag, size = 0x4, scoped, tag = 'scoped memory for tpu_custom_call.1']
    %11 = vsyncpa [#allocation3], 0
    // Predicated region
    $region2: #{tpu_custom_call.1} parent=1 // pred_check
      _
    $region3: #{tpu_custom_call.1} parent=1 // pred_check_branch
      %13 = sbr.rel (0) target = $region5
    $region4: #{tpu_custom_call.1} parent=1 // pred_region
      _
    $region5: #{tpu_custom_call.1} parent=1 // pred_fallthru
      _
    // Predicated region
    $region6: #{tpu_custom_call.1} parent=1 // pred_check
      _
    $region7: #{tpu_custom_call.1} parent=1 // pred_check_branch
      %15 = sbr.rel (0) target = $region9
    $region8: #{tpu_custom_call.1} parent=1 // pred_region
      _
    $region9: #{tpu_custom_call.1} parent=1 // pred_fallthru
      _
    // Predicated region
    $region10: #{tpu_custom_call.1} parent=1 // pred_check
      _
    $region11: #{tpu_custom_call.1} parent=1 // pred_check_branch
      %17 = sbr.rel (0) target = $region13
    $region12: #{tpu_custom_call.1} parent=1 // pred_region
      _
    $region13: #{tpu_custom_call.1} parent=1 // pred_fallthru
      _
    // Predicated region
    $region14: #{tpu_custom_call.1} parent=1 // pred_check
      _
    $region15: #{tpu_custom_call.1} parent=1 // pred_check_branch
      %19 = sbr.rel (0) target = $region17
    $region16: #{tpu_custom_call.1} parent=1 // pred_region
      _
    $region17: #{tpu_custom_call.1} parent=1 // pred_fallthru
      _
    // Predicated region
    $region18: #{tpu_custom_call.1} parent=1 // pred_check
      _
    $region19: #{tpu_custom_call.1} parent=1 // pred_check_branch
      %21 = sbr.rel (0) target = $region21
    $region20: #{tpu_custom_call.1} parent=1 // pred_region
      _
    $region21: #{tpu_custom_call.1} parent=1 // pred_fallthru
      _
    // Predicated region
    $region22: #{tpu_custom_call.1} parent=1 // pred_check
      _
    $region23: #{tpu_custom_call.1} parent=1 // pred_check_branch
      %23 = sbr.rel (0) target = $region25
    $region24: #{tpu_custom_call.1} parent=1 // pred_region
      _
    $region25: #{tpu_custom_call.1} parent=1 // pred_fallthru
      _
    %v25 = vld [vmem:[%s0] sm:$0xf]
    %v26 = vld [vmem:[%s1] sm:$0xf]
    %v27 = vld [vmem:[%s1 + $0x4] sm:$0xf]
    %v28 = vld [vmem:[%s5] sm:$0xff]
    %v29 = vld [vmem:[%s5 + $0x8] sm:$0xff]
    %31 = vset.pattern.permute.xlu0 0
    %32 = vperm.xlu0 %31, %v28
    %v33 = vpop.permute.xlu0 %32
    %36 = vset.pattern.permute.xlu0 0
    %37 = vperm.xlu0 %36, %v29
    %v38 = vpop.permute.xlu0 %37
    %v42 = vunpack.c.l.b16 %v26
    %v43 = vunpack.c.l.b16 %v27
    %v44 = vpack.c.b16 %v43, %v42
    %vm45 = vcmask 64512
    %v47 = vsel %vm45, %v44, 0
    %vm49 = vcmask 1043456
    %v51 = vsel %vm49, %v25, 0
    %53 = vmatpush.bf16.msra.mxu0 0
    %54 = vmatpush.bf16.msra.mxu0 0
    %55 = vmatpush.bf16.msra.mxu0 0
    %56 = vmatpush.bf16.msra.mxu0 0
    %57 = vmatpush.bf16.msra.mxu0 0
    %58 = vmatpush.bf16.msra.mxu0 0
    %59 = vmatpush.bf16.msra.mxu0 0
    %60 = vmatpush.bf16.msra.mxu0 %v51
    %61 = vmatmul.bf16.gmra.mxu0 %v47
    %v62 = vpop.f32.mrf.mxu0
    %v63 = vadd.f32 %v33, %v62
    %v64 = vpop.f32.mrf.mxu0
    %v65 = vadd.f32 %v38, %v64
    %66 = vdwg.mxu0
    %v67 = vmax.f32 %v63, 0.0
    %v68 = vmax.f32 %v65, 0.0
    %v69 = vpack.c.bf16 %v68, %v67
    %v70 = vld [vmem:[%s2] sm:$0xf]
    %v71 = vld [vmem:[%s2 + $0x4] sm:$0xf]
    %v72 = vld [vmem:[%s2 + $0x8] sm:$0xf]
    %v73 = vld [vmem:[%s2 + $0xc] sm:$0xf]
    %v74 = vld [vmem:[%s5 + $0x10] sm:$0xff]
    %v75 = vld [vmem:[%s5 + $0x18] sm:$0xff]
    %v76 = vld [vmem:[%s5 + $0x20] sm:$0xff]
    %v77 = vld [vmem:[%s5 + $0x28] sm:$0xff]
    %79 = vset.pattern.permute.xlu0 0
    %80 = vperm.xlu0 %79, %v74
    %v81 = vpop.permute.xlu0 %80
    %84 = vset.pattern.permute.xlu0 0
    %85 = vperm.xlu0 %84, %v75
    %v86 = vpop.permute.xlu0 %85
    %89 = vset.pattern.permute.xlu0 0
    %90 = vperm.xlu0 %89, %v76
    %v91 = vpop.permute.xlu0 %90
    %94 = vset.pattern.permute.xlu0 0
    %95 = vperm.xlu0 %94, %v77
    %v96 = vpop.permute.xlu0 %95
    %v102 = vunpack.c.l.b16 %v70
    %v103 = vunpack.c.l.b16 %v71
    %v104 = vunpack.c.l.b16 %v72
    %v105 = vunpack.c.l.b16 %v73
    %v106 = vpack.c.b16 %v103, %v102
    %v107 = vpack.c.b16 %v105, %v104
    %vm108 = vcmask 130048
    %v110 = vsel %vm108, %v106, 0
    %v113 = vsel %vm108, %v107, 0
    %115 = vmatpush.bf16.msra.mxu0 0
    %116 = vmatpush.bf16.msra.mxu0 0
    %117 = vmatpush.bf16.msra.mxu0 0
    %118 = vmatpush.bf16.msra.mxu0 0
    %119 = vmatpush.bf16.msra.mxu0 0
    %120 = vmatpush.bf16.msra.mxu0 0
    %121 = vmatpush.bf16.msra.mxu0 0
    %122 = vmatpush.bf16.msra.mxu0 %v69
    %123 = vmatmul.bf16.gmra.mxu0 %v110
    %v124 = vpop.f32.mrf.mxu0
    %v125 = vadd.f32 %v81, %v124
    %v126 = vpop.f32.mrf.mxu0
    %v127 = vadd.f32 %v86, %v126
    %128 = vmatmul.bf16.gmra.mxu0 %v113
    %v129 = vpop.f32.mrf.mxu0
    %v130 = vadd.f32 %v91, %v129
    %v131 = vpop.f32.mrf.mxu0
    %v132 = vadd.f32 %v96, %v131
    %133 = vdwg.mxu0
    %v134 = vmax.f32 %v125, 0.0
    %v135 = vmax.f32 %v127, 0.0
    %v136 = vmax.f32 %v130, 0.0
    %v137 = vmax.f32 %v132, 0.0
    %v138 = vpack.c.bf16 %v135, %v134
    %v139 = vpack.c.bf16 %v137, %v136
    %v140 = vld [vmem:[%s3] sm:$0xf]
    %v141 = vld [vmem:[%s3 + $0x4] sm:$0xf]
    %v142 = vld [vmem:[%s3 + $0x8] sm:$0xf]
    %v143 = vld [vmem:[%s3 + $0xc] sm:$0xf]
    %v144 = vld [vmem:[%s3 + $0x10] sm:$0xf]
    %v145 = vld [vmem:[%s3 + $0x14] sm:$0xf]
    %v146 = vld [vmem:[%s3 + $0x18] sm:$0xf]
    %v147 = vld [vmem:[%s3 + $0x1c] sm:$0xf]
    %v148 = vld [vmem:[%s5 + $0x30] sm:$0xff]
    %v149 = vld [vmem:[%s5 + $0x38] sm:$0xff]
    %v150 = vld [vmem:[%s5 + $0x40] sm:$0xff]
    %v151 = vld [vmem:[%s5 + $0x48] sm:$0xff]
    %v152 = vld [vmem:[%s5 + $0x50] sm:$0xff]
    %v153 = vld [vmem:[%s5 + $0x58] sm:$0xff]
    %v154 = vld [vmem:[%s5 + $0x60] sm:$0xff]
    %v155 = vld [vmem:[%s5 + $0x68] sm:$0xff]
    %157 = vset.pattern.permute.xlu0 0
    %158 = vperm.xlu0 %157, %v148
    %v159 = vpop.permute.xlu0 %158
    %162 = vset.pattern.permute.xlu0 0
    %163 = vperm.xlu0 %162, %v149
    %v164 = vpop.permute.xlu0 %163
    %167 = vset.pattern.permute.xlu0 0
    %168 = vperm.xlu0 %167, %v150
    %v169 = vpop.permute.xlu0 %168
    %172 = vset.pattern.permute.xlu0 0
    %173 = vperm.xlu0 %172, %v151
    %v174 = vpop.permute.xlu0 %173
    %177 = vset.pattern.permute.xlu0 0
    %178 = vperm.xlu0 %177, %v152
    %v179 = vpop.permute.xlu0 %178
    %182 = vset.pattern.permute.xlu0 0
    %183 = vperm.xlu0 %182, %v153
    %v184 = vpop.permute.xlu0 %183
    %187 = vset.pattern.permute.xlu0 0
    %188 = vperm.xlu0 %187, %v154
    %v189 = vpop.permute.xlu0 %188
    %192 = vset.pattern.permute.xlu0 0
    %193 = vperm.xlu0 %192, %v155
    %v194 = vpop.permute.xlu0 %193
    %v204 = vunpack.c.l.b16 %v140
    %v205 = vunpack.c.l.b16 %v141
    %v206 = vunpack.c.l.b16 %v142
    %v207 = vunpack.c.l.b16 %v143
    %v208 = vunpack.c.l.b16 %v144
    %v209 = vunpack.c.l.b16 %v145
    %v210 = vunpack.c.l.b16 %v146
    %v211 = vunpack.c.l.b16 %v147
    %v212 = vpack.c.b16 %v205, %v204
    %v213 = vpack.c.b16 %v207, %v206
    %v214 = vpack.c.b16 %v209, %v208
    %v215 = vpack.c.b16 %v211, %v210
    %vm216 = vcmask 261120
    %v218 = vsel %vm216, %v212, 0
    %v221 = vsel %vm216, %v213, 0
    %v224 = vsel %vm216, %v214, 0
    %v227 = vsel %vm216, %v215, 0
    %229 = vmatpush.bf16.msra.mxu0 0
    %230 = vmatpush.bf16.msra.mxu0 0
    %231 = vmatpush.bf16.msra.mxu0 0
    %232 = vmatpush.bf16.msra.mxu0 0
    %233 = vmatpush.bf16.msra.mxu0 0
    %234 = vmatpush.bf16.msra.mxu0 0
    %235 = vmatpush.bf16.msra.mxu0 %v139
    %236 = vmatpush.bf16.msra.mxu0 %v138
    %237 = vmatmul.bf16.gmra.mxu0 %v218
    %v238 = vpop.f32.mrf.mxu0
    %v239 = vadd.f32 %v159, %v238
    %v240 = vpop.f32.mrf.mxu0
    %v241 = vadd.f32 %v164, %v240
    %242 = vmatmul.bf16.gmra.mxu0 %v221
    %v243 = vpop.f32.mrf.mxu0
    %v244 = vadd.f32 %v169, %v243
    %v245 = vpop.f32.mrf.mxu0
    %v246 = vadd.f32 %v174, %v245
    %247 = vmatmul.bf16.gmra.mxu0 %v224
    %v248 = vpop.f32.mrf.mxu0
    %v249 = vadd.f32 %v179, %v248
    %v250 = vpop.f32.mrf.mxu0
    %v251 = vadd.f32 %v184, %v250
    %252 = vmatmul.bf16.gmra.mxu0 %v227
    %v253 = vpop.f32.mrf.mxu0
    %v254 = vadd.f32 %v189, %v253
    %v255 = vpop.f32.mrf.mxu0
    %v256 = vadd.f32 %v194, %v255
    %257 = vdwg.mxu0
    %v258 = vmax.f32 %v239, 0.0
    %v259 = vmax.f32 %v241, 0.0
    %v260 = vmax.f32 %v244, 0.0
    %v261 = vmax.f32 %v246, 0.0
    %v262 = vmax.f32 %v249, 0.0
    %v263 = vmax.f32 %v251, 0.0
    %v264 = vmax.f32 %v254, 0.0
    %v265 = vmax.f32 %v256, 0.0
    %v266 = vpack.c.bf16 %v259, %v258
    %v267 = vpack.c.bf16 %v261, %v260
    %v268 = vpack.c.bf16 %v263, %v262
    %v269 = vpack.c.bf16 %v265, %v264
    %v270 = vld [vmem:[%s4] sm:$0x3]
    %v271 = vld [vmem:[%s5 + $0x70] sm:$0xf]
    %273 = vset.pattern.permute.xlu0 0
    %274 = vperm.xlu0 %273, %v271
    %v275 = vpop.permute.xlu0 %274
    %vm277 = vcmask 523264
    %v279 = vsel %vm277, %v270, 0
    %281 = vmatpush.bf16.msra.mxu0 0
    %282 = vmatpush.bf16.msra.mxu0 0
    %283 = vmatpush.bf16.msra.mxu0 0
    %284 = vmatpush.bf16.msra.mxu0 0
    %285 = vmatpush.bf16.msra.mxu0 %v269
    %286 = vmatpush.bf16.msra.mxu0 %v268
    %287 = vmatpush.bf16.msra.mxu0 %v267
    %288 = vmatpush.bf16.msra.mxu0 %v266
    %289 = vmatmul.bf16.gmra.mxu0 %v279
    %v290 = vpop.f32.mrf.mxu0
    %v291 = vadd.f32 %v275, %v290
    %v292 = vpop.f32.mrf.mxu0
    %293 = vdwg.mxu0
    %294 = vst [vmem:[#allocation2] sm:$0xf] %v291
    // Predicated region
    $region26: #{tpu_custom_call.1} parent=1 // pred_check
      _
    $region27: #{tpu_custom_call.1} parent=1 // pred_check_branch
      %296 = sbr.rel (0) target = $region29
    $region28: #{tpu_custom_call.1} parent=1 // pred_region
      %298 = vsyncadd [#allocation3], 0
      %s300 = sshll.u32 [#allocation2], 4
      %s301 = int_to_ptr.vmem [resolvable:$true] %s300
      %s302 = sshll.u32 %s6, 4
      %s303 = int_to_ptr.hbm [resolvable:$true] %s302
      %305 = dma.vmem_to_hbm [thread:$0]  %s301, 64, %s303, [#allocation3]
    $region29: #{tpu_custom_call.1} parent=1 // pred_fallthru
      _
    // Predicated region
    $region30: #{tpu_custom_call.1} parent=1 // pred_check
      _
    $region31: #{tpu_custom_call.1} parent=1 // pred_check_branch
      %307 = sbr.rel (0) target = $region33
    $region32: #{tpu_custom_call.1} parent=1 // pred_region
      %309 = dma.done [#allocation3], 64
    $region33: #{tpu_custom_call.1} parent=1 // pred_fallthru
      _
    %310 = vsyncpa [#allocation3], 1

</llo_original>
